<compile_context>
chip_gen: v6e
topology: v6e:2x2x1
jax: 0.10.0
libtpu: 0.0.40
codegen_flags: <defaults>
</compile_context>

<pallas_src>
import functools

import jax
import jax.numpy as jnp
from jax.experimental import pallas as pl
from jax.experimental.pallas import tpu as pltpu


def _signature_int1_kernel(xt_ref, p_ref, o_ref, *, i: int, n_dims: int,
                           n_targets: int):
    # xt_ref: (n_dims, padded_batch) f32 in VMEM (batch on the lane axis).
    # p_ref:  packed [W row-major | bias | buff | pad] f32 in SMEM.
    # o_ref:  (n_targets, padded_batch) f32 in VMEM.
    bias_off = n_targets * n_dims
    buff_off = bias_off + n_targets

    # Hoist every SMEM scalar read out of the vector code (one sld each).
    w = [[p_ref[t * n_dims + d] for d in range(n_dims)]
         for t in range(n_targets)]
    b = [p_ref[bias_off + t] for t in range(n_targets)]
    c = [p_ref[buff_off + t] for t in range(n_targets)]

    # x[:, i:i+1] in the transposed layout is just row i (static int slice).
    x_i = xt_ref[i:i + 1, :]                         # (1, padded_batch)

    for t in range(n_targets):                       # n_targets == 1 here
        # logit_t = sum_d x[:, d] * W[t, d] + b[t]  -- pure VPU broadcast-MAC.
        logit = xt_ref[0:1, :] * w[t][0]
        for d in range(1, n_dims):
            logit = logit + xt_ref[d:d + 1, :] * w[t][d]
        logit = logit + b[t]
        # sigmoid(z) = 1 / (1 + exp(-z)): exp on EUP, approx reciprocal on EUP
        # (vrcp) instead of a VALU divide.
        e = jnp.exp(-logit)
        sig = pl.reciprocal(1.0 + e, approx=True)
        o_ref[t:t + 1, :] = (sig - c[t]) + x_i       # unmasked lane-dense store


def signature_int1(x, weight, bias, buff, i: int = 2):
    """x: (batch, n_dims) f32; weight: (n_targets, n_dims); bias/buff: (n_targets,)."""
    batch, n_dims = x.shape
    n_targets = weight.shape[0]
    assert 0 <= i < n_dims, "slice index i must be a valid static column index"

    # Lane-dense layout: batch on the 128-lane axis, padded to a multiple of 128
    # so every load/store in the kernel is unmasked.
    padded_batch = max(128, ((batch + 127) // 128) * 128)
    xt = jnp.pad(x.astype(jnp.float32).T,
                 ((0, 0), (0, padded_batch - batch)))          # (n_dims, pB)

    # Pack [W row-major | bias | buff | zero-pad] into one tiny SMEM slab.
    n_params = n_targets * n_dims + 2 * n_targets
    padded_params = max(8, 1 << (n_params - 1).bit_length())
    params = jnp.concatenate([
        weight.reshape(-1).astype(jnp.float32),
        bias.reshape(-1).astype(jnp.float32),
        buff.reshape(-1).astype(jnp.float32),
        jnp.zeros((padded_params - n_params,), jnp.float32),
    ])

    cost = pl.CostEstimate(
        flops=padded_batch * n_targets * (2 * n_dims + 3),
        transcendentals=2 * padded_batch * n_targets,          # exp + vrcp
        bytes_accessed=4 * (n_dims * padded_batch
                            + n_targets * padded_batch + padded_params),
    )

    out_t = pl.pallas_call(
        functools.partial(_signature_int1_kernel, i=i, n_dims=n_dims,
                          n_targets=n_targets),
        out_shape=jax.ShapeDtypeStruct((n_targets, padded_batch), jnp.float32),
        in_specs=[
            pl.BlockSpec(memory_space=pltpu.MemorySpace.VMEM),   # x^T (lane-dense)
            pl.BlockSpec(memory_space=pltpu.MemorySpace.SMEM),   # packed params
        ],
        out_specs=pl.BlockSpec(memory_space=pltpu.MemorySpace.VMEM),
        cost_estimate=cost,
    )(xt, params)

    # Back to the PyTorch layout.  For n_targets == 1 the (batch,) -> (batch, 1)
    # reshape is a free bitcast (identical row-major order).
    if n_targets == 1:
        return out_t[0, :batch].reshape(batch, 1)
    return out_t[:, :batch].T


def _reference(x, weight, bias, buff, i: int = 2):
    logits = x @ weight.T + bias
    return jax.nn.sigmoid(logits) - buff + x[:, i:i + 1]


if __name__ == "__main__":
    n_dims, n_targets = 3, 1
    batch = 8
    i = 2

    key = jax.random.PRNGKey(0)
    kw, kb = jax.random.split(key, 2)

    # Deterministic parameter init (PyTorch Linear-style uniform bound).
    bound = 1.0 / (n_dims ** 0.5)
    weight = jax.random.uniform(kw, (n_targets, n_dims), jnp.float32, -bound, bound)
    bias = jax.random.uniform(kb, (n_targets,), jnp.float32, -bound, bound)
    buff = jnp.full((n_targets,), 0.5, dtype=jnp.float32)

    # Input matching the module's second example input: arange(8*3)+10, i=2.
    x = (jnp.arange(batch * n_dims, dtype=jnp.float32) + 10.0).reshape(batch, n_dims)

    out = jax.block_until_ready(signature_int1(x, weight, bias, buff, i=i))

    ref = _reference(x, weight, bias, buff, i=i)
    assert out.shape == (batch, n_targets)
    # Tolerance loosened slightly for pl.reciprocal(approx=True).
    assert jnp.allclose(out, ref, atol=1e-3, rtol=1e-3), float(jnp.max(jnp.abs(out - ref)))

    print("KERNEL_OK")
</pallas_src>

<mosaic_0001>
module attributes {stable_mosaic.version = 11 : i64} {
  func.func @_signature_int1_kernel(%arg0: memref<3x128xf32, #tpu.memory_space<vmem>>, %arg1: memref<8xf32, #tpu.memory_space<smem>>, %arg2: memref<1x128xf32, #tpu.memory_space<vmem>>) attributes {dimension_semantics = [], scalar_prefetch = 0 : i64, scratch_operands = 0 : i64, tpu.core_type = #tpu.core_type<tc>} {
    %c0 = arith.constant 0 : index
    %0 = memref.load %arg1[%c0] : memref<8xf32, #tpu.memory_space<smem>>
    %c1 = arith.constant 1 : index
    %1 = memref.load %arg1[%c1] : memref<8xf32, #tpu.memory_space<smem>>
    %c2 = arith.constant 2 : index
    %2 = memref.load %arg1[%c2] : memref<8xf32, #tpu.memory_space<smem>>
    %c3 = arith.constant 3 : index
    %3 = memref.load %arg1[%c3] : memref<8xf32, #tpu.memory_space<smem>>
    %c4 = arith.constant 4 : index
    %4 = memref.load %arg1[%c4] : memref<8xf32, #tpu.memory_space<smem>>
    %c2_0 = arith.constant 2 : index
    %c0_1 = arith.constant 0 : index
    %5 = vector.load %arg0[%c2_0, %c0_1] : memref<3x128xf32, #tpu.memory_space<vmem>>, vector<1x128xf32>
    %c0_2 = arith.constant 0 : index
    %c0_3 = arith.constant 0 : index
    %6 = vector.load %arg0[%c0_2, %c0_3] : memref<3x128xf32, #tpu.memory_space<vmem>>, vector<1x128xf32>
    %7 = vector.broadcast %0 : f32 to vector<1x128xf32>
    %8 = arith.mulf %6, %7 : vector<1x128xf32>
    %c1_4 = arith.constant 1 : index
    %c0_5 = arith.constant 0 : index
    %9 = vector.load %arg0[%c1_4, %c0_5] : memref<3x128xf32, #tpu.memory_space<vmem>>, vector<1x128xf32>
    %10 = vector.broadcast %1 : f32 to vector<1x128xf32>
    %11 = arith.mulf %9, %10 : vector<1x128xf32>
    %12 = arith.addf %8, %11 : vector<1x128xf32>
    %c2_6 = arith.constant 2 : index
    %c0_7 = arith.constant 0 : index
    %13 = vector.load %arg0[%c2_6, %c0_7] : memref<3x128xf32, #tpu.memory_space<vmem>>, vector<1x128xf32>
    %14 = vector.broadcast %2 : f32 to vector<1x128xf32>
    %15 = arith.mulf %13, %14 : vector<1x128xf32>
    %16 = arith.addf %12, %15 : vector<1x128xf32>
    %17 = vector.broadcast %3 : f32 to vector<1x128xf32>
    %18 = arith.addf %16, %17 : vector<1x128xf32>
    %cst = arith.constant 0.000000e+00 : f32
    %19 = vector.broadcast %cst : f32 to vector<1x128xf32>
    %20 = arith.subf %19, %18 : vector<1x128xf32>
    %21 = math.exp %20 : vector<1x128xf32>
    %cst_8 = arith.constant 1.000000e+00 : f32
    %22 = vector.broadcast %cst_8 : f32 to vector<1x128xf32>
    %23 = arith.addf %22, %21 : vector<1x128xf32>
    %24 = tpu.reciprocal %23 {approx = true} : vector<1x128xf32> -> vector<1x128xf32>
    %25 = vector.broadcast %4 : f32 to vector<1x128xf32>
    %26 = arith.subf %24, %25 : vector<1x128xf32>
    %27 = arith.addf %26, %5 : vector<1x128xf32>
    %c0_9 = arith.constant 0 : index
    %c0_10 = arith.constant 0 : index
    %28 = vector.load %arg2[%c0_9, %c0_10] : memref<1x128xf32, #tpu.memory_space<vmem>>, vector<1x128xf32>
    tpu.vector_store %arg2[%c0_9, %c0_10], %27 {strides = array<i32>} : memref<1x128xf32, #tpu.memory_space<vmem>>, vector<1x128xf32>,
    return
  }
}

</mosaic_0001>

<llo_original>
// kernel: tpu_custom_call.1
$region0: #{tpu_custom_call.1}
  #allocation0 [shape = 'u32[]', space=smem, size = 0x4, offset = 0x4, fixed_abs, tag = 'smem constant byte address 0x4 - core index']
  #allocation1 [shape = 'u32[144,128]{1,0:T(1,128)}', space=vmem, size = 0x12000, scoped, tag = 'internal scratch']
  %s0 = inlined_call_operand.hbm [shape: f32[3,128], index: 0, kind: input, shape index: {}]
  %s1 = inlined_call_operand.vmem [shape: f32[8], index: 1, kind: input, shape index: {}]
  %s2 = inlined_call_operand.hbm [shape: f32[1,128], index: 2, kind: output, shape index: {}]
  %s3 = sld [smem:[#allocation0]]
  $region26: #{tpu_custom_call.1} parent=0
    _
  %s5 = ssub.s32 1, %s3
  %s6 = scalar_select 0, %s5, %s3
  $region1: #{tpu_custom_call.1} parent=0
    #allocation2 [shape = 'u8[2048]{0}', space=vmem, size = 0x800, scoped, tag = 'input window, operand 0, single buffered']
    #allocation3 [shape = 's32[1]{0}', space=sflag, size = 0x4, scoped, tag = 'scoped memory for tpu_custom_call.1']
    #allocation4 [shape = 's32[1]{0}', space=sflag, size = 0x4, scoped, tag = 'scoped memory for tpu_custom_call.1']
    #allocation5 [shape = 's32[1]{0}', space=sflag, size = 0x4, scoped, tag = 'scoped memory for tpu_custom_call.1']
    #allocation6 [shape = 'u8[512]{0}', space=smem, size = 0x200, scoped, tag = 'input window, operand 1, single buffered']
    #allocation7 [shape = 'u8[512]{0}', space=vmem, size = 0x400, scoped, tag = 'output window, operand 0, single buffered']
    %7 = vsyncpa [#allocation3], 0
    %8 = vsyncpa [#allocation5], 0
    %9 = vsyncpa [#allocation4], 0
    // Predicated region
    $region2: #{tpu_custom_call.1} parent=1 // pred_check
      _
    $region3: #{tpu_custom_call.1} parent=1 // pred_check_branch
      %11 = sbr.rel (0) target = $region5
    $region4: #{tpu_custom_call.1} parent=1 // pred_region
      %s13 = ssub.s32 64, 64
      %14 = vsyncadd [#allocation3], %s13
      %s16 = sshll.u32 [#allocation2], 4
      %s17 = int_to_ptr.vmem [resolvable:$true] %s16
      %19 = dma.hbm_to_vmem [thread:$0]  %s0, 64, %s17, [#allocation3]
    $region5: #{tpu_custom_call.1} parent=1 // pred_fallthru
      _
    // Predicated region
    $region6: #{tpu_custom_call.1} parent=1 // pred_check
      _
    $region7: #{tpu_custom_call.1} parent=1 // pred_check_branch
      %21 = sbr.rel (0) target = $region9
    $region8: #{tpu_custom_call.1} parent=1 // pred_region
      %s23 = ssub.s32 16, 16
      %24 = vsyncadd [#allocation5], %s23
      %s26 = sshll.u32 %s1, 4
      %s27 = int_to_ptr.vmem [resolvable:$true] %s26
      %29 = dma.vmem_to_smem %s27, 16, [#allocation6], [#allocation5]
    $region9: #{tpu_custom_call.1} parent=1 // pred_fallthru
      _
    // Predicated region
    $region10: #{tpu_custom_call.1} parent=1 // pred_check
      _
    $region11: #{tpu_custom_call.1} parent=1 // pred_check_branch
      %31 = sbr.rel (0) target = $region13
    $region12: #{tpu_custom_call.1} parent=1 // pred_region
      %32 = dma.done [#allocation3], 64
    $region13: #{tpu_custom_call.1} parent=1 // pred_fallthru
      _
    // Predicated region
    $region14: #{tpu_custom_call.1} parent=1 // pred_check
      _
    $region15: #{tpu_custom_call.1} parent=1 // pred_check_branch
      %34 = sbr.rel (0) target = $region17
    $region16: #{tpu_custom_call.1} parent=1 // pred_region
      %35 = dma.done [#allocation5], 16
    $region17: #{tpu_custom_call.1} parent=1 // pred_fallthru
      _
    %36 = sfence
    %s37 = sld [smem:[#allocation6]]
    %s38 = sld [smem:[#allocation6 + $0x1]]
    %s39 = sld [smem:[#allocation6 + $0x2]]
    %s40 = sld [smem:[#allocation6 + $0x3]]
    %s41 = sld [smem:[#allocation6 + $0x4]]
    %v42 = vld [vmem:[#allocation2 + $0x2] sm:$0x1]
    %v43 = vld [vmem:[#allocation2] sm:$0x1]
    %v44 = vstv %s37
    %v45 = vmul.f32 %v43, %v44
    %v46 = vld [vmem:[#allocation2 + $0x1] sm:$0x1]
    %v47 = vstv %s38
    %v48 = vmul.f32 %v46, %v47
    %v49 = vadd.f32 %v45, %v48
    %v50 = vstv %s39
    %v51 = vmul.f32 %v42, %v50
    %v52 = vadd.f32 %v49, %v51
    %v53 = vstv %s40
    %v54 = vadd.f32 %v52, %v53
    %v55 = vsub.f32 0.0, %v54
    %v56 = vmul.f32 %v55, 1.442695
    %v57 = vpow.pop %v56
    %v58 = vadd.f32 %v57, 1.0
    %v59 = vrcp.pop %v58
    %v60 = vstv %s41
    %v61 = vsub.f32 %v59, %v60
    %v62 = vadd.f32 %v61, %v42
    %63 = vst [vmem:[#allocation7] sm:$0x1] %v62
    // Predicated region
    $region18: #{tpu_custom_call.1} parent=1 // pred_check
      _
    $region19: #{tpu_custom_call.1} parent=1 // pred_check_branch
      %65 = sbr.rel (0) target = $region21
    $region20: #{tpu_custom_call.1} parent=1 // pred_region
      %s67 = ssub.s32 16, 16
      %68 = vsyncadd [#allocation4], %s67
      %s70 = sshll.u32 [#allocation7], 4
      %s71 = int_to_ptr.vmem [resolvable:$true] %s70
      %73 = dma.vmem_to_hbm [thread:$0]  %s71, 16, %s2, [#allocation4]
    $region21: #{tpu_custom_call.1} parent=1 // pred_fallthru
      _
    // Predicated region
    $region22: #{tpu_custom_call.1} parent=1 // pred_check
      _
    $region23: #{tpu_custom_call.1} parent=1 // pred_check_branch
      %75 = sbr.rel (0) target = $region25
    $region24: #{tpu_custom_call.1} parent=1 // pred_region
      %76 = dma.done [#allocation4], 16
    $region25: #{tpu_custom_call.1} parent=1 // pred_fallthru
      _
    %77 = vsyncpa [#allocation3], 1
    %78 = vsyncpa [#allocation4], 1
    %79 = vsyncpa [#allocation5], 1

</llo_original>
